<compile_context>
chip_gen: v7x
topology: tpu7x:2x2x1
jax: 0.10.0
libtpu: 0.0.40
codegen_flags: <defaults>
</compile_context>

<pallas_src>
import functools
import math

import jax
import jax.numpy as jnp
from jax.experimental import pallas as pl
from jax.experimental.pallas import tpu as pltpu

HIDDEN = 256      # hidden width of each Critic MLP:  [obs+act, 256, 256, 1]
OUT_PAD = 128     # final layer padded from 1 -> 128 output lanes (lane-dense stores)


def _round_up(x, m):
    return (x + m - 1) // m * m


def q_ensemble_kernel(x_ref, w1_ref, b1_ref, w2_ref, b2_ref, w3_ref, b3_ref, out_ref):
    """One ensemble member (grid axis 0) on one batch tile (grid axis 1).

    Matmuls run in bf16 on the MXU with f32 accumulation; bias-add / ReLU stay in
    f32 on the VPU (v5e has no bf16 VPU path).  The 1-wide Q head is padded to 128
    output lanes so the final matmul + store are unmasked and lane-dense.
    """
    x = x_ref[...]                                                  # (TILE_B, in_dim) bf16
    h1 = jnp.dot(x, w1_ref[...], preferred_element_type=jnp.float32) + b1_ref[...]
    h1 = jnp.maximum(h1, 0.0)
    h2 = jnp.dot(h1.astype(w2_ref.dtype), w2_ref[...],
                 preferred_element_type=jnp.float32) + b2_ref[...]
    h2 = jnp.maximum(h2, 0.0)
    q = jnp.dot(h2.astype(w3_ref.dtype), w3_ref[...],
                preferred_element_type=jnp.float32) + b3_ref[...]
    out_ref[...] = q.astype(out_ref.dtype)                          # (TILE_B, OUT_PAD)


@functools.partial(jax.jit, static_argnames=("tile_b",))
def q_ensemble_forward(states, actions, params, *, tile_b=256):
    """Pallas forward of Q_Ensemble: Q(s, a) for all members -> shape [..., E]."""
    w1, b1, w2, b2, w3, b3 = params
    E = w1.shape[0]

    # Critic.forward broadcast rule: extra leading dim on actions -> tile states.
    if actions.ndim == states.ndim + 1:
        states = jnp.broadcast_to(states[None], (actions.shape[0],) + states.shape)
    x = jnp.concatenate([states, actions], axis=-1)
    lead_shape = x.shape[:-1]
    in_dim = x.shape[-1]
    x2d = x.reshape(-1, in_dim)
    B = x2d.shape[0]

    # Batch tiling: biggest tile (<= tile_b) that is a multiple of 8 sublanes.
    tb = min(tile_b, _round_up(B, 8))
    Bp = _round_up(B, tb)
    if Bp != B:
        x2d = jnp.pad(x2d, ((0, Bp - B), (0, 0)))

    # Lane-dense head: zero-pad the 1-wide final layer to OUT_PAD columns.
    w3p = jnp.pad(w3, ((0, 0), (0, 0), (0, OUT_PAD - w3.shape[-1])))
    b3p = jnp.pad(b3, ((0, 0), (0, 0), (0, OUT_PAD - b3.shape[-1])))

    # bf16 MXU inputs, f32 accumulate; biases stay f32.
    bf16 = jnp.bfloat16
    x_bf = x2d.astype(bf16)
    w1_bf, w2_bf, w3_bf = w1.astype(bf16), w2.astype(bf16), w3p.astype(bf16)

    grid = (E, Bp // tb)   # ensemble outer -> per-member weights stay VMEM-resident
    flops = 2 * E * Bp * (in_dim * HIDDEN + HIDDEN * HIDDEN + HIDDEN * OUT_PAD)
    bytes_accessed = (
        E * Bp * in_dim * 2                                   # x re-read per member
        + (w1_bf.size + w2_bf.size + w3_bf.size) * 2
        + (b1.size + b2.size + b3p.size) * 4
        + E * Bp * OUT_PAD * 4)

    out_padded = pl.pallas_call(
        q_ensemble_kernel,
        out_shape=jax.ShapeDtypeStruct((E, Bp, OUT_PAD), jnp.float32),
        grid=grid,
        in_specs=[
            # same batch tile is fed to every ensemble member
            pl.BlockSpec((tb, in_dim), lambda e, b: (b, 0)),
            # per-member weights/biases: index_map constant over the batch axis,
            # so they are DMA'd once per member and stay resident across tiles.
            pl.BlockSpec((None, in_dim, HIDDEN), lambda e, b: (e, 0, 0)),
            pl.BlockSpec((None, 1, HIDDEN), lambda e, b: (e, 0, 0)),
            pl.BlockSpec((None, HIDDEN, HIDDEN), lambda e, b: (e, 0, 0)),
            pl.BlockSpec((None, 1, HIDDEN), lambda e, b: (e, 0, 0)),
            pl.BlockSpec((None, HIDDEN, OUT_PAD), lambda e, b: (e, 0, 0)),
            pl.BlockSpec((None, 1, OUT_PAD), lambda e, b: (e, 0, 0)),
        ],
        out_specs=pl.BlockSpec((None, tb, OUT_PAD), lambda e, b: (e, b, 0)),
        compiler_params=pltpu.CompilerParams(
            dimension_semantics=("parallel", "parallel")),   # shards over v7x's 2 TCs
        cost_estimate=pl.CostEstimate(
            flops=flops, transcendentals=0, bytes_accessed=bytes_accessed),
    )(x_bf, w1_bf, b1, w2_bf, b2, w3_bf, b3p)

    q = out_padded[:, :B, 0]           # [E, B]  (true Q head is column 0)
    q = jnp.transpose(q, (1, 0))       # [B, E]  == torch.cat(per-member outputs, dim=-1)
    return q.reshape(lead_shape + (E,))


def init_params(key, act_size, obs_size, num_networks=2):
    """PyTorch-style Linear init (U(-1/sqrt(fan_in), 1/sqrt(fan_in))), stacked over E."""
    in_dim = act_size + obs_size
    dims = [in_dim, HIDDEN, HIDDEN, 1]
    params = []
    for fan_in, fan_out in zip(dims[:-1], dims[1:]):
        key, kw, kb = jax.random.split(key, 3)
        bound = 1.0 / math.sqrt(fan_in)
        w = jax.random.uniform(kw, (num_networks, fan_in, fan_out),
                               minval=-bound, maxval=bound, dtype=jnp.float32)
        b = jax.random.uniform(kb, (num_networks, 1, fan_out),
                               minval=-bound, maxval=bound, dtype=jnp.float32)
        params += [w, b]
    return tuple(params)


def reference_forward(states, actions, params, *, use_bf16=True):
    """Plain-JAX reference (per-member loop, like the PyTorch ModuleList)."""
    w1, b1, w2, b2, w3, b3 = params
    E = w1.shape[0]
    if actions.ndim == states.ndim + 1:
        states = jnp.broadcast_to(states[None], (actions.shape[0],) + states.shape)
    x = jnp.concatenate([states, actions], axis=-1)
    lead_shape = x.shape[:-1]
    x2d = x.reshape(-1, x.shape[-1])
    cast = (lambda a: a.astype(jnp.bfloat16)) if use_bf16 else (lambda a: a)
    outs = []
    for e in range(E):
        h1 = jnp.maximum(jnp.dot(cast(x2d), cast(w1[e]),
                                 preferred_element_type=jnp.float32) + b1[e], 0.0)
        h2 = jnp.maximum(jnp.dot(cast(h1), cast(w2[e]),
                                 preferred_element_type=jnp.float32) + b2[e], 0.0)
        q = jnp.dot(cast(h2), cast(w3[e]),
                    preferred_element_type=jnp.float32) + b3[e]
        outs.append(q)                         # [B, 1]
    out = jnp.concatenate(outs, axis=-1)       # [B, E]
    return out.reshape(lead_shape + (E,))


if __name__ == "__main__":
    obs_size, act_size, num_networks, batch = 32, 4, 2, 12

    key = jax.random.PRNGKey(0)
    k_params, k_states, k_actions = jax.random.split(key, 3)
    params = init_params(k_params, act_size, obs_size, num_networks)
    states = jax.random.normal(k_states, (batch, obs_size), dtype=jnp.float32)
    actions = jax.random.normal(k_actions, (batch, act_size), dtype=jnp.float32)

    q = q_ensemble_forward(states, actions, params)
    q = jax.block_until_ready(q)
    assert q.shape == (batch, num_networks)

    # Exact-semantics check (bf16 MXU + f32 accumulate) and loose check vs full-f32 math.
    q_ref_bf16 = reference_forward(states, actions, params, use_bf16=True)
    q_ref_f32 = reference_forward(states, actions, params, use_bf16=False)
    assert jnp.allclose(q, q_ref_bf16, atol=1e-2, rtol=1e-2)
    assert jnp.allclose(q, q_ref_f32, atol=1e-1, rtol=1e-1)

    print("KERNEL_OK")
</pallas_src>

<mosaic_0001>
module attributes {stable_mosaic.version = 11 : i64} {
  func.func @q_ensemble_kernel(%arg0: i32, %arg1: i32, %arg2: memref<16x36xbf16, #tpu.memory_space<vmem>>, %arg3: memref<1x36x256xbf16, #tpu.memory_space<vmem>>, %arg4: memref<1x1x256xf32, #tpu.memory_space<vmem>>, %arg5: memref<1x256x256xbf16, #tpu.memory_space<vmem>>, %arg6: memref<1x1x256xf32, #tpu.memory_space<vmem>>, %arg7: memref<1x256x128xbf16, #tpu.memory_space<vmem>>, %arg8: memref<1x1x128xf32, #tpu.memory_space<vmem>>, %arg9: memref<1x16x128xf32, #tpu.memory_space<vmem>>) attributes {dimension_semantics = [#tpu.dimension_semantics<parallel>, #tpu.dimension_semantics<parallel>], iteration_bounds = array<i64: 2, 1>, scalar_prefetch = 0 : i64, scratch_operands = 0 : i64, tpu.core_type = #tpu.core_type<tc>, window_params = [{transform_indices = @transform_0, window_bounds = array<i64: 16, 36>}, {transform_indices = @transform_1, window_bounds = array<i64: 1, 36, 256>}, {transform_indices = @transform_2, window_bounds = array<i64: 1, 1, 256>}, {transform_indices = @transform_3, window_bounds = array<i64: 1, 256, 256>}, {transform_indices = @transform_4, window_bounds = array<i64: 1, 1, 256>}, {transform_indices = @transform_5, window_bounds = array<i64: 1, 256, 128>}, {transform_indices = @transform_6, window_bounds = array<i64: 1, 1, 128>}, {transform_indices = @transform_7, window_bounds = array<i64: 1, 16, 128>}]} {
    %c0 = arith.constant 0 : index
    %c0_0 = arith.constant 0 : index
    %0 = vector.load %arg2[%c0, %c0_0] : memref<16x36xbf16, #tpu.memory_space<vmem>>, vector<16x36xbf16>
    %c0_1 = arith.constant 0 : index
    %c0_2 = arith.constant 0 : index
    %c0_3 = arith.constant 0 : index
    %1 = vector.load %arg3[%c0_1, %c0_2, %c0_3] : memref<1x36x256xbf16, #tpu.memory_space<vmem>>, vector<1x36x256xbf16>
    %2 = vector.shape_cast %1 : vector<1x36x256xbf16> to vector<36x256xbf16>
    %cst = arith.constant dense<0.000000e+00> : vector<16x256xf32>
    %3 = tpu.matmul %0, %2, %cst {dimension_numbers = #tpu.dot_dimension_numbers<[1], [0], [0], [1], [0, 0, 1, 1], [], []>} : vector<16x36xbf16>, vector<36x256xbf16>, vector<16x256xf32> -> vector<16x256xf32>
    %c0_4 = arith.constant 0 : index
    %c0_5 = arith.constant 0 : index
    %c0_6 = arith.constant 0 : index
    %4 = vector.load %arg4[%c0_4, %c0_5, %c0_6] : memref<1x1x256xf32, #tpu.memory_space<vmem>>, vector<1x1x256xf32>
    %5 = vector.shape_cast %4 : vector<1x1x256xf32> to vector<1x256xf32>
    %6 = vector.broadcast %5 : vector<1x256xf32> to vector<16x256xf32>
    %7 = arith.addf %3, %6 : vector<16x256xf32>
    %cst_7 = arith.constant 0.000000e+00 : f32
    %8 = vector.broadcast %cst_7 : f32 to vector<16x256xf32>
    %9 = arith.maximumf %7, %8 : vector<16x256xf32>
    %10 = arith.truncf %9 : vector<16x256xf32> to vector<16x256xbf16>
    %c0_8 = arith.constant 0 : index
    %c0_9 = arith.constant 0 : index
    %c0_10 = arith.constant 0 : index
    %11 = vector.load %arg5[%c0_8, %c0_9, %c0_10] : memref<1x256x256xbf16, #tpu.memory_space<vmem>>, vector<1x256x256xbf16>
    %12 = vector.shape_cast %11 : vector<1x256x256xbf16> to vector<256x256xbf16>
    %cst_11 = arith.constant dense<0.000000e+00> : vector<16x256xf32>
    %13 = tpu.matmul %10, %12, %cst_11 {dimension_numbers = #tpu.dot_dimension_numbers<[1], [0], [0], [1], [0, 0, 1, 1], [], []>} : vector<16x256xbf16>, vector<256x256xbf16>, vector<16x256xf32> -> vector<16x256xf32>
    %c0_12 = arith.constant 0 : index
    %c0_13 = arith.constant 0 : index
    %c0_14 = arith.constant 0 : index
    %14 = vector.load %arg6[%c0_12, %c0_13, %c0_14] : memref<1x1x256xf32, #tpu.memory_space<vmem>>, vector<1x1x256xf32>
    %15 = vector.shape_cast %14 : vector<1x1x256xf32> to vector<1x256xf32>
    %16 = vector.broadcast %15 : vector<1x256xf32> to vector<16x256xf32>
    %17 = arith.addf %13, %16 : vector<16x256xf32>
    %cst_15 = arith.constant 0.000000e+00 : f32
    %18 = vector.broadcast %cst_15 : f32 to vector<16x256xf32>
    %19 = arith.maximumf %17, %18 : vector<16x256xf32>
    %20 = arith.truncf %19 : vector<16x256xf32> to vector<16x256xbf16>
    %c0_16 = arith.constant 0 : index
    %c0_17 = arith.constant 0 : index
    %c0_18 = arith.constant 0 : index
    %21 = vector.load %arg7[%c0_16, %c0_17, %c0_18] : memref<1x256x128xbf16, #tpu.memory_space<vmem>>, vector<1x256x128xbf16>
    %22 = vector.shape_cast %21 : vector<1x256x128xbf16> to vector<256x128xbf16>
    %cst_19 = arith.constant dense<0.000000e+00> : vector<16x128xf32>
    %23 = tpu.matmul %20, %22, %cst_19 {dimension_numbers = #tpu.dot_dimension_numbers<[1], [0], [0], [1], [0, 0, 1, 1], [], []>} : vector<16x256xbf16>, vector<256x128xbf16>, vector<16x128xf32> -> vector<16x128xf32>
    %c0_20 = arith.constant 0 : index
    %c0_21 = arith.constant 0 : index
    %c0_22 = arith.constant 0 : index
    %24 = vector.load %arg8[%c0_20, %c0_21, %c0_22] : memref<1x1x128xf32, #tpu.memory_space<vmem>>, vector<1x1x128xf32>
    %25 = vector.shape_cast %24 : vector<1x1x128xf32> to vector<1x128xf32>
    %26 = vector.broadcast %25 : vector<1x128xf32> to vector<16x128xf32>
    %27 = arith.addf %23, %26 : vector<16x128xf32>
    %c0_23 = arith.constant 0 : index
    %c0_24 = arith.constant 0 : index
    %c0_25 = arith.constant 0 : index
    %28 = vector.load %arg9[%c0_23, %c0_24, %c0_25] : memref<1x16x128xf32, #tpu.memory_space<vmem>>, vector<1x16x128xf32>
    %29 = vector.shape_cast %28 : vector<1x16x128xf32> to vector<16x128xf32>
    %30 = vector.shape_cast %27 : vector<16x128xf32> to vector<1x16x128xf32>
    tpu.vector_store %arg9[%c0_23, %c0_24, %c0_25], %30 {strides = array<i32>} : memref<1x16x128xf32, #tpu.memory_space<vmem>>, vector<1x16x128xf32>,
    return
  }
  func.func @transform_0(%arg0: i32, %arg1: i32) -> (i32, i32) {
    %c0_i32 = arith.constant 0 : i32
    %c0_i32_0 = arith.constant 0 : i32
    return %arg1, %c0_i32 : i32, i32
  }
  func.func @transform_1(%arg0: i32, %arg1: i32) -> (i32, i32, i32) {
    %c0_i32 = arith.constant 0 : i32
    %c0_i32_0 = arith.constant 0 : i32
    %c0_i32_1 = arith.constant 0 : i32
    return %arg0, %c0_i32, %c0_i32_0 : i32, i32, i32
  }
  func.func @transform_2(%arg0: i32, %arg1: i32) -> (i32, i32, i32) {
    %c0_i32 = arith.constant 0 : i32
    %c0_i32_0 = arith.constant 0 : i32
    %c0_i32_1 = arith.constant 0 : i32
    return %arg0, %c0_i32, %c0_i32_0 : i32, i32, i32
  }
  func.func @transform_3(%arg0: i32, %arg1: i32) -> (i32, i32, i32) {
    %c0_i32 = arith.constant 0 : i32
    %c0_i32_0 = arith.constant 0 : i32
    %c0_i32_1 = arith.constant 0 : i32
    return %arg0, %c0_i32, %c0_i32_0 : i32, i32, i32
  }
  func.func @transform_4(%arg0: i32, %arg1: i32) -> (i32, i32, i32) {
    %c0_i32 = arith.constant 0 : i32
    %c0_i32_0 = arith.constant 0 : i32
    %c0_i32_1 = arith.constant 0 : i32
    return %arg0, %c0_i32, %c0_i32_0 : i32, i32, i32
  }
  func.func @transform_5(%arg0: i32, %arg1: i32) -> (i32, i32, i32) {
    %c0_i32 = arith.constant 0 : i32
    %c0_i32_0 = arith.constant 0 : i32
    %c0_i32_1 = arith.constant 0 : i32
    return %arg0, %c0_i32, %c0_i32_0 : i32, i32, i32
  }
  func.func @transform_6(%arg0: i32, %arg1: i32) -> (i32, i32, i32) {
    %c0_i32 = arith.constant 0 : i32
    %c0_i32_0 = arith.constant 0 : i32
    %c0_i32_1 = arith.constant 0 : i32
    return %arg0, %c0_i32, %c0_i32_0 : i32, i32, i32
  }
  func.func @transform_7(%arg0: i32, %arg1: i32) -> (i32, i32, i32) {
    %c0_i32 = arith.constant 0 : i32
    %c0_i32_0 = arith.constant 0 : i32
    return %arg0, %arg1, %c0_i32 : i32, i32, i32
  }
}

</mosaic_0001>

<llo_original>
// kernel: q_ensemble_forward.1
$region0: #{q_ensemble_forward.1}
  #allocation0 [shape = 'u32[]', space=smem, size = 0x4, offset = 0x4, fixed_abs, tag = 'smem constant byte address 0x4 - core index']
  #allocation1 [shape = 'u32[144,128]{1,0:T(1,128)}', space=vmem, size = 0x12000, scoped, tag = 'internal scratch']
  %s0 = inlined_call_operand.vmem [shape: bf16[16,36], index: 0, kind: input, shape index: {}]
  %s1 = inlined_call_operand.vmem [shape: bf16[2,36,256], index: 1, kind: input, shape index: {}]
  %s2 = inlined_call_operand.vmem [shape: f32[2,1,256], index: 2, kind: input, shape index: {}]
  %s3 = inlined_call_operand.vmem [shape: bf16[2,256,256], index: 3, kind: input, shape index: {}]
  %s4 = inlined_call_operand.vmem [shape: f32[2,1,256], index: 4, kind: input, shape index: {}]
  %s5 = inlined_call_operand.vmem [shape: bf16[2,256,128], index: 5, kind: input, shape index: {}]
  %s6 = inlined_call_operand.vmem [shape: f32[2,1,128], index: 6, kind: input, shape index: {}]
  %s7 = inlined_call_operand.vmem [shape: f32[2,16,128], index: 7, kind: output, shape index: {}]
  %s8 = sld [smem:[#allocation0]]
  $region61: #{q_ensemble_forward.1} parent=0
    _
  %s10 = ssub.s32 1, %s8
  %s11 = scalar_select 0, %s10, %s8
  loop: start=0, step=1, limit=4
  $region2: #{q_ensemble_forward.1} parent=0 // loop_pre_header
    _
  $region3: #{q_ensemble_forward.1} parent=0 // loop_header
    %s13 = sphi 0, %s17
    %p14 = scmp.ge.s32.totalorder %s13, 4
    %s20 = sphi 0, %s32
    %s21 = sphi 0, %s28
    %s22 = sphi 0, %s20
    %s23 = sphi 0, %s21
    %s24 = sphi 0, %s22
    %s25 = sphi 0, %s23
    %s35 = sphi 0, %s37
    %s38 = sphi 0, %s35
    %s39 = sphi 0, %s38
    %s55 = sphi 0, %s39
    %s61 = sphi 0, %s63
    %s64 = sphi 0, %s61
    %s65 = sphi 0, %s64
    %s81 = sphi 0, %s65
    %s87 = sphi 0, %s89
    %s90 = sphi 0, %s87
    %s91 = sphi 0, %s90
    %s107 = sphi 0, %s91
    %s113 = sphi 0, %s115
    %s116 = sphi 0, %s113
    %s117 = sphi 0, %s116
    %s133 = sphi 0, %s117
    %s139 = sphi 0, %s141
    %s142 = sphi 0, %s139
    %s143 = sphi 0, %s142
    %s159 = sphi 0, %s143
    %s165 = sphi 0, %s167
    %s168 = sphi 0, %s165
    %s169 = sphi 0, %s168
    %s185 = sphi 0, %s169
    %s191 = sphi 0, %s193
    %s194 = sphi 0, %s191
    %s195 = sphi 0, %s194
    %s211 = sphi 0, %s195
    %s219 = sphi 0, %s221
    %s222 = sphi 0, %s219
    %s223 = sphi 0, %s222
    %s239 = sphi 0, %s223
  $region4: #{q_ensemble_forward.1} parent=0 // loop_header_branch
    %16 = sbr.rel (%p14) target = $region8
  $region5: #{q_ensemble_forward.1} parent=0 // loop_body
    %s18 = ssub.s32 %s13, 1
    %s19 = ssub.s32 %s13, 2
    %s26 = sadd.s32 1, %s21
    %p27 = scmp.ge.s32.totalorder %s26, 1
    %s28 = scalar_select %p27, 0, %s26
    %s29 = sadd.s32 1, %s20
    %s30 = scalar_select %p27, %s29, %s20
    %p31 = scmp.ge.s32.totalorder %s30, 2
    %s32 = scalar_select %p31, 0, %s30
    %s33 = ssub.s32 %s21, %s28
    %p34 = scmp.eq.s32.totalorder %s33, 0
    %s36 = sadd.s32 %s35, 1
    %s37 = scalar_select %p34, %s35, %s36
    %p40 = pneg %p34
    %p41 = scmp.eq.s32.totalorder %s13, 1
    %p42 = por %p40, %p41
    %p43 = scmp.ne.s32.totalorder %s35, %s38
    %p44 = scmp.eq.s32.totalorder %s13, 0
    %p45 = por %p43, %p44
    %p46 = scmp.ne.s32.totalorder %s35, %s38
    %p47 = scmp.eq.s32.totalorder %s18, 1
    %p48 = por %p46, %p47
    %p49 = scmp.ne.s32.totalorder %s38, %s39
    %p50 = scmp.eq.s32.totalorder %s18, 0
    %p51 = por %p49, %p50
    %p52 = scmp.ne.s32.totalorder %s38, %s39
    %p53 = scmp.eq.s32.totalorder %s19, 1
    %p54 = por %p52, %p53
    %p56 = scmp.ne.s32.totalorder %s39, %s55
    %p57 = scmp.eq.s32.totalorder %s19, 0
    %p58 = por %p56, %p57
    %s59 = ssub.s32 %s20, %s32
    %p60 = scmp.eq.s32.totalorder %s59, 0
    %s62 = sadd.s32 %s61, 1
    %s63 = scalar_select %p60, %s61, %s62
    %p66 = pneg %p60
    %p67 = scmp.eq.s32.totalorder %s13, 1
    %p68 = por %p66, %p67
    %p69 = scmp.ne.s32.totalorder %s61, %s64
    %p70 = scmp.eq.s32.totalorder %s13, 0
    %p71 = por %p69, %p70
    %p72 = scmp.ne.s32.totalorder %s61, %s64
    %p73 = scmp.eq.s32.totalorder %s18, 1
    %p74 = por %p72, %p73
    %p75 = scmp.ne.s32.totalorder %s64, %s65
    %p76 = scmp.eq.s32.totalorder %s18, 0
    %p77 = por %p75, %p76
    %p78 = scmp.ne.s32.totalorder %s64, %s65
    %p79 = scmp.eq.s32.totalorder %s19, 1
    %p80 = por %p78, %p79
    %p82 = scmp.ne.s32.totalorder %s65, %s81
    %p83 = scmp.eq.s32.totalorder %s19, 0
    %p84 = por %p82, %p83
    %s85 = ssub.s32 %s20, %s32
    %p86 = scmp.eq.s32.totalorder %s85, 0
    %s88 = sadd.s32 %s87, 1
    %s89 = scalar_select %p86, %s87, %s88
    %p92 = pneg %p86
    %p93 = scmp.eq.s32.totalorder %s13, 1
    %p94 = por %p92, %p93
    %p95 = scmp.ne.s32.totalorder %s87, %s90
    %p96 = scmp.eq.s32.totalorder %s13, 0
    %p97 = por %p95, %p96
    %p98 = scmp.ne.s32.totalorder %s87, %s90
    %p99 = scmp.eq.s32.totalorder %s18, 1
    %p100 = por %p98, %p99
    %p101 = scmp.ne.s32.totalorder %s90, %s91
    %p102 = scmp.eq.s32.totalorder %s18, 0
    %p103 = por %p101, %p102
    %p104 = scmp.ne.s32.totalorder %s90, %s91
    %p105 = scmp.eq.s32.totalorder %s19, 1
    %p106 = por %p104, %p105
    %p108 = scmp.ne.s32.totalorder %s91, %s107
    %p109 = scmp.eq.s32.totalorder %s19, 0
    %p110 = por %p108, %p109
    %s111 = ssub.s32 %s20, %s32
    %p112 = scmp.eq.s32.totalorder %s111, 0
    %s114 = sadd.s32 %s113, 1
    %s115 = scalar_select %p112, %s113, %s114
    %p118 = pneg %p112
    %p119 = scmp.eq.s32.totalorder %s13, 1
    %p120 = por %p118, %p119
    %p121 = scmp.ne.s32.totalorder %s113, %s116
    %p122 = scmp.eq.s32.totalorder %s13, 0
    %p123 = por %p121, %p122
    %p124 = scmp.ne.s32.totalorder %s113, %s116
    %p125 = scmp.eq.s32.totalorder %s18, 1
    %p126 = por %p124, %p125
    %p127 = scmp.ne.s32.totalorder %s116, %s117
    %p128 = scmp.eq.s32.totalorder %s18, 0
    %p129 = por %p127, %p128
    %p130 = scmp.ne.s32.totalorder %s116, %s117
    %p131 = scmp.eq.s32.totalorder %s19, 1
    %p132 = por %p130, %p131
    %p134 = scmp.ne.s32.totalorder %s117, %s133
    %p135 = scmp.eq.s32.totalorder %s19, 0
    %p136 = por %p134, %p135
    %s137 = ssub.s32 %s20, %s32
    %p138 = scmp.eq.s32.totalorder %s137, 0
    %s140 = sadd.s32 %s139, 1
    %s141 = scalar_select %p138, %s139, %s140
    %p144 = pneg %p138
    %p145 = scmp.eq.s32.totalorder %s13, 1
    %p146 = por %p144, %p145
    %p147 = scmp.ne.s32.totalorder %s139, %s142
    %p148 = scmp.eq.s32.totalorder %s13, 0
    %p149 = por %p147, %p148
    %p150 = scmp.ne.s32.totalorder %s139, %s142
    %p151 = scmp.eq.s32.totalorder %s18, 1
    %p152 = por %p150, %p151
    %p153 = scmp.ne.s32.totalorder %s142, %s143
    %p154 = scmp.eq.s32.totalorder %s18, 0
    %p155 = por %p153, %p154
    %p156 = scmp.ne.s32.totalorder %s142, %s143
    %p157 = scmp.eq.s32.totalorder %s19, 1
    %p158 = por %p156, %p157
    %p160 = scmp.ne.s32.totalorder %s143, %s159
    %p161 = scmp.eq.s32.totalorder %s19, 0
    %p162 = por %p160, %p161
    %s163 = ssub.s32 %s20, %s32
    %p164 = scmp.eq.s32.totalorder %s163, 0
    %s166 = sadd.s32 %s165, 1
    %s167 = scalar_select %p164, %s165, %s166
    %p170 = pneg %p164
    %p171 = scmp.eq.s32.totalorder %s13, 1
    %p172 = por %p170, %p171
    %p173 = scmp.ne.s32.totalorder %s165, %s168
    %p174 = scmp.eq.s32.totalorder %s13, 0
    %p175 = por %p173, %p174
    %p176 = scmp.ne.s32.totalorder %s165, %s168
    %p177 = scmp.eq.s32.totalorder %s18, 1
    %p178 = por %p176, %p177
    %p179 = scmp.ne.s32.totalorder %s168, %s169
    %p180 = scmp.eq.s32.totalorder %s18, 0
    %p181 = por %p179, %p180
    %p182 = scmp.ne.s32.totalorder %s168, %s169
    %p183 = scmp.eq.s32.totalorder %s19, 1
    %p184 = por %p182, %p183
    %p186 = scmp.ne.s32.totalorder %s169, %s185
    %p187 = scmp.eq.s32.totalorder %s19, 0
    %p188 = por %p186, %p187
    %s189 = ssub.s32 %s20, %s32
    %p190 = scmp.eq.s32.totalorder %s189, 0
    %s192 = sadd.s32 %s191, 1
    %s193 = scalar_select %p190, %s191, %s192
    %p196 = pneg %p190
    %p197 = scmp.eq.s32.totalorder %s13, 1
    %p198 = por %p196, %p197
    %p199 = scmp.ne.s32.totalorder %s191, %s194
    %p200 = scmp.eq.s32.totalorder %s13, 0
    %p201 = por %p199, %p200
    %p202 = scmp.ne.s32.totalorder %s191, %s194
    %p203 = scmp.eq.s32.totalorder %s18, 1
    %p204 = por %p202, %p203
    %p205 = scmp.ne.s32.totalorder %s194, %s195
    %p206 = scmp.eq.s32.totalorder %s18, 0
    %p207 = por %p205, %p206
    %p208 = scmp.ne.s32.totalorder %s194, %s195
    %p209 = scmp.eq.s32.totalorder %s19, 1
    %p210 = por %p208, %p209
    %p212 = scmp.ne.s32.totalorder %s195, %s211
    %p213 = scmp.eq.s32.totalorder %s19, 0
    %p214 = por %p212, %p213
    %s215 = ssub.s32 %s20, %s32
    %s216 = ssub.s32 %s21, %s28
    %s217 = sor.u32 %s215, %s216
    %p218 = scmp.eq.s32.totalorder %s217, 0
    %s220 = sadd.s32 %s219, 1
    %s221 = scalar_select %p218, %s219, %s220
    %p224 = pneg %p218
    %p225 = scmp.eq.s32.totalorder %s13, 1
    %p226 = por %p224, %p225
    %p227 = scmp.ne.s32.totalorder %s219, %s222
    %p228 = scmp.eq.s32.totalorder %s13, 0
    %p229 = por %p227, %p228
    %p230 = scmp.ne.s32.totalorder %s219, %s222
    %p231 = scmp.eq.s32.totalorder %s18, 1
    %p232 = por %p230, %p231
    %p233 = scmp.ne.s32.totalorder %s222, %s223
    %p234 = scmp.eq.s32.totalorder %s18, 0
    %p235 = por %p233, %p234
    %p236 = scmp.ne.s32.totalorder %s222, %s223
    %p237 = scmp.eq.s32.totalorder %s19, 1
    %p238 = por %p236, %p237
    %p240 = scmp.ne.s32.totalorder %s223, %s239
    %p241 = scmp.eq.s32.totalorder %s19, 0
    %p242 = por %p240, %p241
    %p243 = scmp.le.s32.totalorder 1, %s13
    %p244 = scmp.lt.s32.totalorder %s13, 3
    %p245 = pnand %p243, %p244
    %p246 = pneg %p245
    // Predicated region
    $region9: #{q_ensemble_forward.1} parent=5 // pred_check
      _
    $region10: #{q_ensemble_forward.1} parent=5 // pred_check_branch
      %248 = sbr.rel (%p245) target = $region12
    $region11: #{q_ensemble_forward.1} parent=5 // pred_region
      %s249 = ssub.s32 %s13, 1
      // Predicated region
      $region13: #{q_ensemble_forward.1} parent=11 // pred_check
        %p250 = pneg %p51
      $region14: #{q_ensemble_forward.1} parent=11 // pred_check_branch
        %252 = sbr.rel (%p250) target = $region16
      $region15: #{q_ensemble_forward.1} parent=11 // pred_region
        %s253 = smul.u32 2, %s23
        %p254 = scmp.lt.s32.totalorder %s253, 1
        %s255 = scalar_select %p254, %s253, 1
        %s256 = smul.addr %s255, 4
        %s257 = scalar_lea.vmem %s0, %s256
        %s258 = smul.u32 2, %s23
      $region16: #{q_ensemble_forward.1} parent=11 // pred_fallthru
        _
    $region12: #{q_ensemble_forward.1} parent=5 // pred_fallthru
      _
    %p259 = scmp.lt.s32.totalorder %s13, 2
    // Predicated region
    $region17: #{q_ensemble_forward.1} parent=5 // pred_check
      %p260 = pneg %p259
    $region18: #{q_ensemble_forward.1} parent=5 // pred_check_branch
      %262 = sbr.rel (%p260) target = $region20
    $region19: #{q_ensemble_forward.1} parent=5 // pred_region
      // Predicated region
      $region21: #{q_ensemble_forward.1} parent=19 // pred_check
        %p263 = pneg %p71
      $region22: #{q_ensemble_forward.1} parent=19 // pred_check_branch
        %265 = sbr.rel (%p263) target = $region24
      $region23: #{q_ensemble_forward.1} parent=19 // pred_region
        %p266 = scmp.lt.s32.totalorder %s20, 1
        %s267 = scalar_select %p266, %s20, 1
        %s268 = smul.addr %s267, 10
        %s269 = smul.addr %s268, 4
        %s270 = scalar_lea.vmem %s1, %s269
      $region24: #{q_ensemble_forward.1} parent=19 // pred_fallthru
        _
      // Predicated region
      $region25: #{q_ensemble_forward.1} parent=19 // pred_check
        %p271 = pneg %p97
      $region26: #{q_ensemble_forward.1} parent=19 // pred_check_branch
        %273 = sbr.rel (%p271) target = $region28
      $region27: #{q_ensemble_forward.1} parent=19 // pred_region
        %p274 = scmp.lt.s32.totalorder %s20, 1
        %s275 = scalar_select %p274, %s20, 1
        %s276 = smul.addr %s275, 2
        %s277 = scalar_lea.vmem %s2, %s276
      $region28: #{q_ensemble_forward.1} parent=19 // pred_fallthru
        _
      // Predicated region
      $region29: #{q_ensemble_forward.1} parent=19 // pred_check
        %p278 = pneg %p123
      $region30: #{q_ensemble_forward.1} parent=19 // pred_check_branch
        %280 = sbr.rel (%p278) target = $region32
      $region31: #{q_ensemble_forward.1} parent=19 // pred_region
        %p281 = scmp.lt.s32.totalorder %s20, 1
        %s282 = scalar_select %p281, %s20, 1
        %s283 = smul.addr %s282, 64
        %s284 = smul.addr %s283, 4
        %s285 = scalar_lea.vmem %s3, %s284
      $region32: #{q_ensemble_forward.1} parent=19 // pred_fallthru
        _
      // Predicated region
      $region33: #{q_ensemble_forward.1} parent=19 // pred_check
        %p286 = pneg %p149
      $region34: #{q_ensemble_forward.1} parent=19 // pred_check_branch
        %288 = sbr.rel (%p286) target = $region36
      $region35: #{q_ensemble_forward.1} parent=19 // pred_region
        %p289 = scmp.lt.s32.totalorder %s20, 1
        %s290 = scalar_select %p289, %s20, 1
        %s291 = smul.addr %s290, 2
        %s292 = scalar_lea.vmem %s4, %s291
      $region36: #{q_ensemble_forward.1} parent=19 // pred_fallthru
        _
      // Predicated region
      $region37: #{q_ensemble_forward.1} parent=19 // pred_check
        %p293 = pneg %p175
      $region38: #{q_ensemble_forward.1} parent=19 // pred_check_branch
        %295 = sbr.rel (%p293) target = $region40
      $region39: #{q_ensemble_forward.1} parent=19 // pred_region
        %p296 = scmp.lt.s32.totalorder %s20, 1
        %s297 = scalar_select %p296, %s20, 1
        %s298 = smul.addr %s297, 32
        %s299 = smul.addr %s298, 4
        %s300 = scalar_lea.vmem %s5, %s299
      $region40: #{q_ensemble_forward.1} parent=19 // pred_fallthru
        _
      // Predicated region
      $region41: #{q_ensemble_forward.1} parent=19 // pred_check
        %p301 = pneg %p201
      $region42: #{q_ensemble_forward.1} parent=19 // pred_check_branch
        %303 = sbr.rel (%p301) target = $region44
      $region43: #{q_ensemble_forward.1} parent=19 // pred_region
        %p304 = scmp.lt.s32.totalorder %s20, 1
        %s305 = scalar_select %p304, %s20, 1
        %s306 = scalar_lea.vmem %s6, %s305
      $region44: #{q_ensemble_forward.1} parent=19 // pred_fallthru
        _
    $region20: #{q_ensemble_forward.1} parent=5 // pred_fallthru
      _
    %p307 = scmp.le.s32.totalorder 1, %s13
    %p308 = scmp.lt.s32.totalorder %s13, 3
    %p309 = pnand %p307, %p308
    %p310 = pneg %p309
    // Predicated region
    $region45: #{q_ensemble_forward.1} parent=5 // pred_check
      _
    $region46: #{q_ensemble_forward.1} parent=5 // pred_check_branch
      %312 = sbr.rel (%p309) target = $region48
    $region47: #{q_ensemble_forward.1} parent=5 // pred_region
      %s313 = ssub.s32 %s13, 1
      %s314 = smul.u32 2, %s23
      %p315 = scmp.lt.s32.totalorder %s314, 1
      %s316 = scalar_select %p315, %s314, 1
      %s317 = smul.addr %s316, 4
      %s318 = scalar_lea.vmem %s0, %s317
      %p319 = pneg %p51
      %p320 = pneg %p48
      %p321 = scmp.lt.s32.totalorder %s22, 1
      %s322 = scalar_select %p321, %s22, 1
      %s323 = smul.addr %s322, 10
      %s324 = smul.addr %s323, 4
      %s325 = scalar_lea.vmem %s1, %s324
      %p326 = pneg %p77
      %p327 = pneg %p74
      %p328 = scmp.lt.s32.totalorder %s22, 1
      %s329 = scalar_select %p328, %s22, 1
      %s330 = smul.addr %s329, 2
      %s331 = scalar_lea.vmem %s2, %s330
      %p332 = pneg %p103
      %p333 = pneg %p100
      %p334 = scmp.lt.s32.totalorder %s22, 1
      %s335 = scalar_select %p334, %s22, 1
      %s336 = smul.addr %s335, 64
      %s337 = smul.addr %s336, 4
      %s338 = scalar_lea.vmem %s3, %s337
      %p339 = pneg %p129
      %p340 = pneg %p126
      %p341 = scmp.lt.s32.totalorder %s22, 1
      %s342 = scalar_select %p341, %s22, 1
      %s343 = smul.addr %s342, 2
      %s344 = scalar_lea.vmem %s4, %s343
      %p345 = pneg %p155
      %p346 = pneg %p152
      %p347 = scmp.lt.s32.totalorder %s22, 1
      %s348 = scalar_select %p347, %s22, 1
      %s349 = smul.addr %s348, 32
      %s350 = smul.addr %s349, 4
      %s351 = scalar_lea.vmem %s5, %s350
      %p352 = pneg %p181
      %p353 = pneg %p178
      %p354 = scmp.lt.s32.totalorder %s22, 1
      %s355 = scalar_select %p354, %s22, 1
      %s356 = scalar_lea.vmem %s6, %s355
      %p357 = pneg %p207
      %p358 = pneg %p204
      %p359 = pneg %p235
      %p360 = pneg %p232
      %s361 = smul.u32 2, %s23
      %p362 = scmp.lt.s32.totalorder %s22, 1
      %s363 = scalar_select %p362, %s22, 1
      %p364 = scmp.lt.s32.totalorder %s361, 1
      %s365 = scalar_select %p364, %s361, 1
      %s366 = smul.addr %s363, 2
      %s367 = sadd.s32 %s365, %s366
      %s368 = smul.addr %s367, 8
      %s369 = scalar_lea.vmem %s7, %s368
      %s370 = smul.u32 2, %s23
      %p371 = scmp.lt.s32.totalorder %s370, 1
      %s372 = scalar_select %p371, %s370, 1
      %s373 = smul.addr %s372, 4
      %s374 = scalar_lea.vmem %s0, %s373
      %s375 = smul.u32 2, %s23
      %p376 = scmp.lt.s32.totalorder %s22, 1
      %s377 = scalar_select %p376, %s22, 1
      %s378 = smul.addr %s377, 10
      %s379 = smul.addr %s378, 4
      %s380 = scalar_lea.vmem %s1, %s379
      %p381 = scmp.lt.s32.totalorder %s22, 1
      %s382 = scalar_select %p381, %s22, 1
      %s383 = smul.addr %s382, 2
      %s384 = scalar_lea.vmem %s2, %s383
      %p385 = scmp.lt.s32.totalorder %s22, 1
      %s386 = scalar_select %p385, %s22, 1
      %s387 = smul.addr %s386, 64
      %s388 = smul.addr %s387, 4
      %s389 = scalar_lea.vmem %s3, %s388
      %p390 = scmp.lt.s32.totalorder %s22, 1
      %s391 = scalar_select %p390, %s22, 1
      %s392 = smul.addr %s391, 2
      %s393 = scalar_lea.vmem %s4, %s392
      %p394 = scmp.lt.s32.totalorder %s22, 1
      %s395 = scalar_select %p394, %s22, 1
      %s396 = smul.addr %s395, 32
      %s397 = smul.addr %s396, 4
      %s398 = scalar_lea.vmem %s5, %s397
      %p399 = scmp.lt.s32.totalorder %s22, 1
      %s400 = scalar_select %p399, %s22, 1
      %s401 = scalar_lea.vmem %s6, %s400
      %s402 = smul.u32 2, %s23
      %p403 = scmp.lt.s32.totalorder %s22, 1
      %s404 = scalar_select %p403, %s22, 1
      %p405 = scmp.lt.s32.totalorder %s402, 1
      %s406 = scalar_select %p405, %s402, 1
      %s407 = smul.addr %s404, 2
      %s408 = sadd.s32 %s406, %s407
      %s409 = smul.addr %s408, 8
      %s410 = scalar_lea.vmem %s7, %s409
      %s411 = smul.u32 2, %s23
      %v413 = vld [vmem:[%s374] sm:$0xf]
      %v414 = vld [vmem:[%s374 + $0x4] sm:$0xf]
      %v415 = vld [vmem:[%s380] sm:$0xff]
      %v416 = vld [vmem:[%s380 + $0x8] sm:$0xff]
      %v417 = vld [vmem:[%s380 + $0x10] sm:$0xff]
      %v418 = vld [vmem:[%s380 + $0x18] sm:$0xff]
      %v419 = vld [vmem:[%s380 + $0x20] sm:$0x33]
      %v420 = vld [vmem:[%s384] sm:$0x3]
      %v422 = vlaneseq
      %v423 = vshrl.u32 %v422, 7
      %v424 = vsub.s32 0, %v423
      %v425 = vrot.slane %v420, %v424
      %v426 = vlaneseq
      %v427 = vshrl.u32 %v426, 7
      %v428 = vsub.s32 1, %v427
      %v429 = vrot.slane %v420, %v428
      %v434 = vunpack.c.l.b16 %v413
      %v435 = vunpack.c.l.b16 %v414
      %v436 = vpack.c.b16 %v435, %v434
      %v442 = vunpack.c.l.b16 %v415
      %v443 = vunpack.c.h.b16 %v415
      %v444 = vunpack.c.l.b16 %v416
      %v445 = vunpack.c.h.b16 %v416
      %v446 = vunpack.c.l.b16 %v417
      %v447 = vunpack.c.h.b16 %v417
      %v448 = vunpack.c.l.b16 %v418
      %v449 = vunpack.c.h.b16 %v418
      %v450 = vunpack.c.l.b16 %v419
      %v451 = vunpack.c.h.b16 %v419
      %v452 = vpack.c.b16 %v444, %v442
      %v453 = vpack.c.b16 %v445, %v443
      %v454 = vpack.c.b16 %v448, %v446
      %v455 = vpack.c.b16 %v449, %v447
      %v456 = vpack.c.b16 %v450, %v450
      %v457 = vpack.c.b16 %v451, %v451
      %vm462 = vcmask 293888
      %v464 = vsel %vm462, %v436, 0
      %vm466 = vcmask 1041408
      %v468 = vsel %vm466, %v456, 0
      %v471 = vsel %vm466, %v457, 0
      %473 = vmatprep.subr.bf16.mxu0 %v453
      %474 = vmatpush1.bf16.msra.mxu0 %v452
      %475 = vmatprep.subr.bf16.mxu0 %v455
      %476 = vmatpush1.bf16.msra.mxu0 %v454
      %477 = vmatprep.subr.bf16.mxu0 %v471
      %478 = vmatpush1.bf16.msra.mxu0 %v468
      %479 = vmatprep.subr.bf16.mxu0 0
      %480 = vmatpush1.bf16.msra.mxu0 0
      %481 = vmatprep.subr.bf16.mxu0 0
      %482 = vmatpush1.bf16.msra.mxu0 0
      %483 = vmatprep.subr.bf16.mxu0 0
      %484 = vmatpush1.bf16.msra.mxu0 0
      %485 = vmatprep.subr.bf16.mxu0 0
      %486 = vmatpush1.bf16.msra.mxu0 0
      %487 = vmatprep.subr.bf16.mxu0 0
      %488 = vmatpush1.bf16.msra.mxu0 0
      %489 = vmatprep.subr.bf16.mxu0 0
      %490 = vmatpush1.bf16.msra.mxu0 0
      %491 = vmatprep.subr.bf16.mxu0 0
      %492 = vmatpush1.bf16.msra.mxu0 0
      %493 = vmatprep.subr.bf16.mxu0 0
      %494 = vmatpush1.bf16.msra.mxu0 0
      %495 = vmatprep.subr.bf16.mxu0 0
      %496 = vmatpush1.bf16.msra.mxu0 0
      %497 = vmatprep.subr.bf16.mxu0 0
      %498 = vmatpush1.bf16.msra.mxu0 0
      %499 = vmatprep.subr.bf16.mxu0 0
      %500 = vmatpush1.bf16.msra.mxu0 0
      %501 = vmatprep.subr.bf16.mxu0 0
      %502 = vmatpush1.bf16.msra.mxu0 0
      %503 = vmatprep.subr.bf16.mxu0 0
      %504 = vmatpush1.bf16.msra.mxu0 0
      %505 = vmatprep.mubr.bf16.mxu0 0
      %506 = vmatmul.mubr.bf16.gmra.mrb[0].mxu0 %v464
      %v507 = vpop.f32.mrb[0].mxu0
      %v508 = vadd.f32 %v425, %v507
      %v509 = vpop.f32.mrb[0].mxu0
      %v510 = vadd.f32 %v429, %v509
      %v511 = vpop.f32.mrb[0].mxu0
      %v512 = vadd.f32 %v425, %v511
      %v513 = vpop.f32.mrb[0].mxu0
      %v514 = vadd.f32 %v429, %v513
      %515 = vdwg.mxu0
      %v516 = vmax.f32 %v508, 0.0
      %v517 = vmax.f32 %v510, 0.0
      %v518 = vmax.f32 %v512, 0.0
      %v519 = vmax.f32 %v514, 0.0
      %v520 = vpack.c.bf16 %v518, %v516
      %v521 = vpack.c.bf16 %v519, %v517
      %v522 = vld [vmem:[%s389] sm:$0xff]
      %v523 = vld [vmem:[%s389 + $0x8] sm:$0xff]
      %v524 = vld [vmem:[%s389 + $0x10] sm:$0xff]
      %v525 = vld [vmem:[%s389 + $0x18] sm:$0xff]
      %v526 = vld [vmem:[%s389 + $0x20] sm:$0xff]
      %v527 = vld [vmem:[%s389 + $0x28] sm:$0xff]
      %v528 = vld [vmem:[%s389 + $0x30] sm:$0xff]
      %v529 = vld [vmem:[%s389 + $0x38] sm:$0xff]
      %v530 = vld [vmem:[%s389 + $0x40] sm:$0xff]
      %v531 = vld [vmem:[%s389 + $0x48] sm:$0xff]
      %v532 = vld [vmem:[%s389 + $0x50] sm:$0xff]
      %v533 = vld [vmem:[%s389 + $0x58] sm:$0xff]
      %v534 = vld [vmem:[%s389 + $0x60] sm:$0xff]
      %v535 = vld [vmem:[%s389 + $0x68] sm:$0xff]
      %v536 = vld [vmem:[%s389 + $0x70] sm:$0xff]
      %v537 = vld [vmem:[%s389 + $0x78] sm:$0xff]
      %v538 = vld [vmem:[%s389 + $0x80] sm:$0xff]
      %v539 = vld [vmem:[%s389 + $0x88] sm:$0xff]
      %v540 = vld [vmem:[%s389 + $0x90] sm:$0xff]
      %v541 = vld [vmem:[%s389 + $0x98] sm:$0xff]
      %v542 = vld [vmem:[%s389 + $0xa0] sm:$0xff]
      %v543 = vld [vmem:[%s389 + $0xa8] sm:$0xff]
      %v544 = vld [vmem:[%s389 + $0xb0] sm:$0xff]
      %v545 = vld [vmem:[%s389 + $0xb8] sm:$0xff]
      %v546 = vld [vmem:[%s389 + $0xc0] sm:$0xff]
      %v547 = vld [vmem:[%s389 + $0xc8] sm:$0xff]
      %v548 = vld [vmem:[%s389 + $0xd0] sm:$0xff]
      %v549 = vld [vmem:[%s389 + $0xd8] sm:$0xff]
      %v550 = vld [vmem:[%s389 + $0xe0] sm:$0xff]
      %v551 = vld [vmem:[%s389 + $0xe8] sm:$0xff]
      %v552 = vld [vmem:[%s389 + $0xf0] sm:$0xff]
      %v553 = vld [vmem:[%s389 + $0xf8] sm:$0xff]
      %v554 = vld [vmem:[%s393] sm:$0x3]
      %v556 = vlaneseq
      %v557 = vshrl.u32 %v556, 7
      %v558 = vsub.s32 0, %v557
      %v559 = vrot.slane %v554, %v558
      %v560 = vlaneseq
      %v561 = vshrl.u32 %v560, 7
      %v562 = vsub.s32 1, %v561
      %v563 = vrot.slane %v554, %v562
      %v598 = vunpack.c.l.b16 %v522
      %v599 = vunpack.c.h.b16 %v522
      %v600 = vunpack.c.l.b16 %v523
      %v601 = vunpack.c.h.b16 %v523
      %v602 = vunpack.c.l.b16 %v524
      %v603 = vunpack.c.h.b16 %v524
      %v604 = vunpack.c.l.b16 %v525
      %v605 = vunpack.c.h.b16 %v525
      %v606 = vunpack.c.l.b16 %v526
      %v607 = vunpack.c.h.b16 %v526
      %v608 = vunpack.c.l.b16 %v527
      %v609 = vunpack.c.h.b16 %v527
      %v610 = vunpack.c.l.b16 %v528
      %v611 = vunpack.c.h.b16 %v528
      %v612 = vunpack.c.l.b16 %v529
      %v613 = vunpack.c.h.b16 %v529
      %v614 = vunpack.c.l.b16 %v530
      %v615 = vunpack.c.h.b16 %v530
      %v616 = vunpack.c.l.b16 %v531
      %v617 = vunpack.c.h.b16 %v531
      %v618 = vunpack.c.l.b16 %v532
      %v619 = vunpack.c.h.b16 %v532
      %v620 = vunpack.c.l.b16 %v533
      %v621 = vunpack.c.h.b16 %v533
      %v622 = vunpack.c.l.b16 %v534
      %v623 = vunpack.c.h.b16 %v534
      %v624 = vunpack.c.l.b16 %v535
      %v625 = vunpack.c.h.b16 %v535
      %v626 = vunpack.c.l.b16 %v536
      %v627 = vunpack.c.h.b16 %v536
      %v628 = vunpack.c.l.b16 %v537
      %v629 = vunpack.c.h.b16 %v537
      %v630 = vunpack.c.l.b16 %v538
      %v631 = vunpack.c.h.b16 %v538
      %v632 = vunpack.c.l.b16 %v539
      %v633 = vunpack.c.h.b16 %v539
      %v634 = vunpack.c.l.b16 %v540
      %v635 = vunpack.c.h.b16 %v540
      %v636 = vunpack.c.l.b16 %v541
      %v637 = vunpack.c.h.b16 %v541
      %v638 = vunpack.c.l.b16 %v542
      %v639 = vunpack.c.h.b16 %v542
      %v640 = vunpack.c.l.b16 %v543
      %v641 = vunpack.c.h.b16 %v543
      %v642 = vunpack.c.l.b16 %v544
      %v643 = vunpack.c.h.b16 %v544
      %v644 = vunpack.c.l.b16 %v545
      %v645 = vunpack.c.h.b16 %v545
      %v646 = vunpack.c.l.b16 %v546
      %v647 = vunpack.c.h.b16 %v546
      %v648 = vunpack.c.l.b16 %v547
      %v649 = vunpack.c.h.b16 %v547
      %v650 = vunpack.c.l.b16 %v548
      %v651 = vunpack.c.h.b16 %v548
      %v652 = vunpack.c.l.b16 %v549
      %v653 = vunpack.c.h.b16 %v549
      %v654 = vunpack.c.l.b16 %v550
      %v655 = vunpack.c.h.b16 %v550
      %v656 = vunpack.c.l.b16 %v551
      %v657 = vunpack.c.h.b16 %v551
      %v658 = vunpack.c.l.b16 %v552
      %v659 = vunpack.c.h.b16 %v552
      %v660 = vunpack.c.l.b16 %v553
      %v661 = vunpack.c.h.b16 %v553
      %v662 = vpack.c.b16 %v600, %v598
      %v663 = vpack.c.b16 %v601, %v599
      %v664 = vpack.c.b16 %v604, %v602
      %v665 = vpack.c.b16 %v605, %v603
      %v666 = vpack.c.b16 %v608, %v606
      %v667 = vpack.c.b16 %v609, %v607
      %v668 = vpack.c.b16 %v612, %v610
      %v669 = vpack.c.b16 %v613, %v611
      %v670 = vpack.c.b16 %v616, %v614
      %v671 = vpack.c.b16 %v617, %v615
      %v672 = vpack.c.b16 %v620, %v618
      %v673 = vpack.c.b16 %v621, %v619
      %v674 = vpack.c.b16 %v624, %v622
      %v675 = vpack.c.b16 %v625, %v623
      %v676 = vpack.c.b16 %v628, %v626
      %v677 = vpack.c.b16 %v629, %v627
      %v678 = vpack.c.b16 %v632, %v630
      %v679 = vpack.c.b16 %v633, %v631
      %v680 = vpack.c.b16 %v636, %v634
      %v681 = vpack.c.b16 %v637, %v635
      %v682 = vpack.c.b16 %v640, %v638
      %v683 = vpack.c.b16 %v641, %v639
      %v684 = vpack.c.b16 %v644, %v642
      %v685 = vpack.c.b16 %v645, %v643
      %v686 = vpack.c.b16 %v648, %v646
      %v687 = vpack.c.b16 %v649, %v647
      %v688 = vpack.c.b16 %v652, %v650
      %v689 = vpack.c.b16 %v653, %v651
      %v690 = vpack.c.b16 %v656, %v654
      %v691 = vpack.c.b16 %v657, %v655
      %v692 = vpack.c.b16 %v660, %v658
      %v693 = vpack.c.b16 %v661, %v659
      %726 = vmatprep.subr.bf16.mxu0 %v663
      %727 = vmatpush1.bf16.msra.mxu0 %v662
      %728 = vmatprep.subr.bf16.mxu0 %v665
      %729 = vmatpush1.bf16.msra.mxu0 %v664
      %730 = vmatprep.subr.bf16.mxu0 %v667
      %731 = vmatpush1.bf16.msra.mxu0 %v666
      %732 = vmatprep.subr.bf16.mxu0 %v669
      %733 = vmatpush1.bf16.msra.mxu0 %v668
      %734 = vmatprep.subr.bf16.mxu0 %v671
      %735 = vmatpush1.bf16.msra.mxu0 %v670
      %736 = vmatprep.subr.bf16.mxu0 %v673
      %737 = vmatpush1.bf16.msra.mxu0 %v672
      %738 = vmatprep.subr.bf16.mxu0 %v675
      %739 = vmatpush1.bf16.msra.mxu0 %v674
      %740 = vmatprep.subr.bf16.mxu0 %v677
      %741 = vmatpush1.bf16.msra.mxu0 %v676
      %742 = vmatprep.subr.bf16.mxu0 %v679
      %743 = vmatpush1.bf16.msra.mxu0 %v678
      %744 = vmatprep.subr.bf16.mxu0 %v681
      %745 = vmatpush1.bf16.msra.mxu0 %v680
      %746 = vmatprep.subr.bf16.mxu0 %v683
      %747 = vmatpush1.bf16.msra.mxu0 %v682
      %748 = vmatprep.subr.bf16.mxu0 %v685
      %749 = vmatpush1.bf16.msra.mxu0 %v684
      %750 = vmatprep.subr.bf16.mxu0 %v687
      %751 = vmatpush1.bf16.msra.mxu0 %v686
      %752 = vmatprep.subr.bf16.mxu0 %v689
      %753 = vmatpush1.bf16.msra.mxu0 %v688
      %754 = vmatprep.subr.bf16.mxu0 %v691
      %755 = vmatpush1.bf16.msra.mxu0 %v690
      %756 = vmatprep.subr.bf16.mxu0 %v693
      %757 = vmatpush1.bf16.msra.mxu0 %v692
      %758 = vmatprep.mubr.bf16.mxu0 %v521
      %759 = vmatmul.mubr.bf16.gmra.mrb[0].mxu0 %v520
      %v760 = vpop.f32.mrb[0].mxu0
      %v761 = vadd.f32 %v559, %v760
      %v762 = vpop.f32.mrb[0].mxu0
      %v763 = vadd.f32 %v563, %v762
      %v764 = vpop.f32.mrb[0].mxu0
      %v765 = vadd.f32 %v559, %v764
      %v766 = vpop.f32.mrb[0].mxu0
      %v767 = vadd.f32 %v563, %v766
      %768 = vdwg.mxu0
      %v769 = vmax.f32 %v761, 0.0
      %v770 = vmax.f32 %v763, 0.0
      %v771 = vmax.f32 %v765, 0.0
      %v772 = vmax.f32 %v767, 0.0
      %v773 = vpack.c.bf16 %v771, %v769
      %v774 = vpack.c.bf16 %v772, %v770
      %v775 = vld [vmem:[%s398] sm:$0xf]
      %v776 = vld [vmem:[%s398 + $0x4] sm:$0xf]
      %v777 = vld [vmem:[%s398 + $0x8] sm:$0xf]
      %v778 = vld [vmem:[%s398 + $0xc] sm:$0xf]
      %v779 = vld [vmem:[%s398 + $0x10] sm:$0xf]
      %v780 = vld [vmem:[%s398 + $0x14] sm:$0xf]
      %v781 = vld [vmem:[%s398 + $0x18] sm:$0xf]
      %v782 = vld [vmem:[%s398 + $0x1c] sm:$0xf]
      %v783 = vld [vmem:[%s398 + $0x20] sm:$0xf]
      %v784 = vld [vmem:[%s398 + $0x24] sm:$0xf]
      %v785 = vld [vmem:[%s398 + $0x28] sm:$0xf]
      %v786 = vld [vmem:[%s398 + $0x2c] sm:$0xf]
      %v787 = vld [vmem:[%s398 + $0x30] sm:$0xf]
      %v788 = vld [vmem:[%s398 + $0x34] sm:$0xf]
      %v789 = vld [vmem:[%s398 + $0x38] sm:$0xf]
      %v790 = vld [vmem:[%s398 + $0x3c] sm:$0xf]
      %v791 = vld [vmem:[%s398 + $0x40] sm:$0xf]
      %v792 = vld [vmem:[%s398 + $0x44] sm:$0xf]
      %v793 = vld [vmem:[%s398 + $0x48] sm:$0xf]
      %v794 = vld [vmem:[%s398 + $0x4c] sm:$0xf]
      %v795 = vld [vmem:[%s398 + $0x50] sm:$0xf]
      %v796 = vld [vmem:[%s398 + $0x54] sm:$0xf]
      %v797 = vld [vmem:[%s398 + $0x58] sm:$0xf]
      %v798 = vld [vmem:[%s398 + $0x5c] sm:$0xf]
      %v799 = vld [vmem:[%s398 + $0x60] sm:$0xf]
      %v800 = vld [vmem:[%s398 + $0x64] sm:$0xf]
      %v801 = vld [vmem:[%s398 + $0x68] sm:$0xf]
      %v802 = vld [vmem:[%s398 + $0x6c] sm:$0xf]
      %v803 = vld [vmem:[%s398 + $0x70] sm:$0xf]
      %v804 = vld [vmem:[%s398 + $0x74] sm:$0xf]
      %v805 = vld [vmem:[%s398 + $0x78] sm:$0xf]
      %v806 = vld [vmem:[%s398 + $0x7c] sm:$0xf]
      %v807 = vld [vmem:[%s401] sm:$0x1]
      %v809 = vlaneseq
      %v810 = vshrl.u32 %v809, 7
      %v811 = vsub.s32 0, %v810
      %v812 = vrot.slane %v807, %v811
      %v846 = vunpack.c.l.b16 %v775
      %v847 = vunpack.c.l.b16 %v776
      %v848 = vunpack.c.l.b16 %v777
      %v849 = vunpack.c.l.b16 %v778
      %v850 = vunpack.c.l.b16 %v779
      %v851 = vunpack.c.l.b16 %v780
      %v852 = vunpack.c.l.b16 %v781
      %v853 = vunpack.c.l.b16 %v782
      %v854 = vunpack.c.l.b16 %v783
      %v855 = vunpack.c.l.b16 %v784
      %v856 = vunpack.c.l.b16 %v785
      %v857 = vunpack.c.l.b16 %v786
      %v858 = vunpack.c.l.b16 %v787
      %v859 = vunpack.c.l.b16 %v788
      %v860 = vunpack.c.l.b16 %v789
      %v861 = vunpack.c.l.b16 %v790
      %v862 = vunpack.c.l.b16 %v791
      %v863 = vunpack.c.l.b16 %v792
      %v864 = vunpack.c.l.b16 %v793
      %v865 = vunpack.c.l.b16 %v794
      %v866 = vunpack.c.l.b16 %v795
      %v867 = vunpack.c.l.b16 %v796
      %v868 = vunpack.c.l.b16 %v797
      %v869 = vunpack.c.l.b16 %v798
      %v870 = vunpack.c.l.b16 %v799
      %v871 = vunpack.c.l.b16 %v800
      %v872 = vunpack.c.l.b16 %v801
      %v873 = vunpack.c.l.b16 %v802
      %v874 = vunpack.c.l.b16 %v803
      %v875 = vunpack.c.l.b16 %v804
      %v876 = vunpack.c.l.b16 %v805
      %v877 = vunpack.c.l.b16 %v806
      %v878 = vpack.c.b16 %v847, %v846
      %v879 = vpack.c.b16 %v849, %v848
      %v880 = vpack.c.b16 %v851, %v850
      %v881 = vpack.c.b16 %v853, %v852
      %v882 = vpack.c.b16 %v855, %v854
      %v883 = vpack.c.b16 %v857, %v856
      %v884 = vpack.c.b16 %v859, %v858
      %v885 = vpack.c.b16 %v861, %v860
      %v886 = vpack.c.b16 %v863, %v862
      %v887 = vpack.c.b16 %v865, %v864
      %v888 = vpack.c.b16 %v867, %v866
      %v889 = vpack.c.b16 %v869, %v868
      %v890 = vpack.c.b16 %v871, %v870
      %v891 = vpack.c.b16 %v873, %v872
      %v892 = vpack.c.b16 %v875, %v874
      %v893 = vpack.c.b16 %v877, %v876
      %910 = vmatprep.subr.bf16.mxu0 0
      %911 = vmatpush1.bf16.msra.mxu0 %v878
      %912 = vmatprep.subr.bf16.mxu0 0
      %913 = vmatpush1.bf16.msra.mxu0 %v879
      %914 = vmatprep.subr.bf16.mxu0 0
      %915 = vmatpush1.bf16.msra.mxu0 %v880
      %916 = vmatprep.subr.bf16.mxu0 0
      %917 = vmatpush1.bf16.msra.mxu0 %v881
      %918 = vmatprep.subr.bf16.mxu0 0
      %919 = vmatpush1.bf16.msra.mxu0 %v882
      %920 = vmatprep.subr.bf16.mxu0 0
      %921 = vmatpush1.bf16.msra.mxu0 %v883
      %922 = vmatprep.subr.bf16.mxu0 0
      %923 = vmatpush1.bf16.msra.mxu0 %v884
      %924 = vmatprep.subr.bf16.mxu0 0
      %925 = vmatpush1.bf16.msra.mxu0 %v885
      %926 = vmatprep.subr.bf16.mxu0 0
      %927 = vmatpush1.bf16.msra.mxu0 %v886
      %928 = vmatprep.subr.bf16.mxu0 0
      %929 = vmatpush1.bf16.msra.mxu0 %v887
      %930 = vmatprep.subr.bf16.mxu0 0
      %931 = vmatpush1.bf16.msra.mxu0 %v888
      %932 = vmatprep.subr.bf16.mxu0 0
      %933 = vmatpush1.bf16.msra.mxu0 %v889
      %934 = vmatprep.subr.bf16.mxu0 0
      %935 = vmatpush1.bf16.msra.mxu0 %v890
      %936 = vmatprep.subr.bf16.mxu0 0
      %937 = vmatpush1.bf16.msra.mxu0 %v891
      %938 = vmatprep.subr.bf16.mxu0 0
      %939 = vmatpush1.bf16.msra.mxu0 %v892
      %940 = vmatprep.subr.bf16.mxu0 0
      %941 = vmatpush1.bf16.msra.mxu0 %v893
      %942 = vmatprep.mubr.bf16.mxu0 %v774
      %943 = vmatmul.mubr.bf16.gmra.mrb[0].mxu0 %v773
      %v944 = vpop.f32.mrb[0].mxu0
      %v945 = vadd.f32 %v812, %v944
      %v946 = vpop.f32.mrb[0].mxu0
      %v947 = vpop.f32.mrb[0].mxu0
      %v948 = vadd.f32 %v812, %v947
      %v949 = vpop.f32.mrb[0].mxu0
      %950 = vdwg.mxu0
      %951 = vst [vmem:[%s410] sm:$0xff] %v945
      %952 = vst [vmem:[%s410 + $0x8] sm:$0xff] %v948
      %s953 = smul.u32 2, %s23
      %p954 = scmp.lt.s32.totalorder %s22, 1
      %s955 = scalar_select %p954, %s22, 1
      %p956 = scmp.lt.s32.totalorder %s953, 1
      %s957 = scalar_select %p956, %s953, 1
      %s958 = smul.addr %s955, 2
      %s959 = sadd.s32 %s957, %s958
      %s960 = smul.addr %s959, 8
      %s961 = scalar_lea.vmem %s7, %s960
      // Predicated region
      $region49: #{q_ensemble_forward.1} parent=47 // pred_check
        %p962 = pneg %p232
      $region50: #{q_ensemble_forward.1} parent=47 // pred_check_branch
        %964 = sbr.rel (%p962) target = $region52
      $region51: #{q_ensemble_forward.1} parent=47 // pred_region
        %s965 = smul.u32 2, %s23
      $region52: #{q_ensemble_forward.1} parent=47 // pred_fallthru
        _
    $region48: #{q_ensemble_forward.1} parent=5 // pred_fallthru
      _
    %p966 = scmp.le.s32.totalorder 2, %s13
    // Predicated region
    $region53: #{q_ensemble_forward.1} parent=5 // pred_check
      %p967 = pneg %p966
    $region54: #{q_ensemble_forward.1} parent=5 // pred_check_branch
      %969 = sbr.rel (%p967) target = $region56
    $region55: #{q_ensemble_forward.1} parent=5 // pred_region
      %s970 = ssub.s32 %s13, 2
      // Predicated region
      $region57: #{q_ensemble_forward.1} parent=55 // pred_check
        %p971 = pneg %p238
      $region58: #{q_ensemble_forward.1} parent=55 // pred_check_branch
        %973 = sbr.rel (%p971) target = $region60
      $region59: #{q_ensemble_forward.1} parent=55 // pred_region
        %s974 = smul.u32 2, %s25
        %p975 = scmp.lt.s32.totalorder %s24, 1
        %s976 = scalar_select %p975, %s24, 1
        %p977 = scmp.lt.s32.totalorder %s974, 1
        %s978 = scalar_select %p977, %s974, 1
        %s979 = smul.addr %s976, 2
        %s980 = sadd.s32 %s978, %s979
        %s981 = smul.addr %s980, 8
        %s982 = scalar_lea.vmem %s7, %s981
      $region60: #{q_ensemble_forward.1} parent=55 // pred_fallthru
        _
    $region56: #{q_ensemble_forward.1} parent=5 // pred_fallthru
      _
  $region6: #{q_ensemble_forward.1} parent=0 // loop_footer
    %s17 = sadd.s32 1, %s13
  $region7: #{q_ensemble_forward.1} parent=0 // loop_footer_branch
    %12 = sbr.rel target = $region3
  $region8: #{q_ensemble_forward.1} parent=0 // loop_exit
    _

</llo_original>
